<compile_context>
chip_gen: v6e
topology: v6e:2x2x1
jax: 0.10.0
libtpu: 0.0.40
codegen_flags: <defaults>
</compile_context>

<pallas_src>
import functools

import jax
import jax.numpy as jnp
from jax import lax
from jax.experimental import pallas as pl
from jax.experimental.pallas import tpu as pltpu


# ---------------------------------------------------------------------------
# Stage-1 kernels: per-tile  sum_n tanh(z @ W1 + b1)  with ragged-row masking.
# ---------------------------------------------------------------------------
def _hidden_partial_blockdiag_kernel(n_ref, z_ref, w1_ref, b1_ref, part_ref,
                                     *, tile, chunk, nchunks):
    """z_ref: (tile, M*D);  w1_ref: (M*D, M*H) block-diag;  b1_ref: (1, M*H)."""
    base = pl.program_id(0) * tile
    mh = b1_ref.shape[-1]

    def body(c, acc):
        r0 = c * chunk
        zb = z_ref[pl.ds(pl.multiple_of(r0, chunk), chunk), :]
        hb = jnp.tanh(
            jnp.dot(zb, w1_ref[...], preferred_element_type=jnp.float32)
            + b1_ref[...])
        rows = base + r0 + lax.broadcasted_iota(jnp.int32, (chunk, 1), 0)
        hb = jnp.where(rows < n_ref[0], hb, 0.0)        # padded rows -> exactly 0
        return acc + jnp.sum(hb, axis=0, keepdims=True)

    s = lax.fori_loop(0, nchunks, body, jnp.zeros((1, mh), jnp.float32))
    part_ref[...] = s[:, None, :]                        # store only one sublane


def _hidden_partial_shared_kernel(n_ref, z_ref, w1_ref, b1_ref, part_ref,
                                  *, tile, chunk, nchunks, num_paths, d):
    """Shared-W1 variant for lane-aligned D (D % 128 == 0): no M^2 expansion.
    z_ref: (tile, M*D);  w1_ref: (D, H);  b1_ref: (1, H)."""
    base = pl.program_id(0) * tile
    h = b1_ref.shape[-1]

    def body(c, acc):
        r0 = c * chunk
        zb = z_ref[pl.ds(pl.multiple_of(r0, chunk), chunk), :]
        rows = base + r0 + lax.broadcasted_iota(jnp.int32, (chunk, 1), 0)
        valid = rows < n_ref[0]
        sums = []
        for mp in range(num_paths):                      # static unroll over M
            hm = jnp.tanh(
                jnp.dot(zb[:, mp * d:(mp + 1) * d], w1_ref[...],
                        preferred_element_type=jnp.float32)
                + b1_ref[...])
            hm = jnp.where(valid, hm, 0.0)
            sums.append(jnp.sum(hm, axis=0, keepdims=True))
        return acc + jnp.concatenate(sums, axis=-1)      # (1, M*H)

    s = lax.fori_loop(0, nchunks, body,
                      jnp.zeros((1, num_paths * h), jnp.float32))
    part_ref[...] = s[:, None, :]


# ---------------------------------------------------------------------------
# Stage-2 kernel: weighted sum over metapaths as one lane-dense matmul.
#   z_ref: (tile, M*D);  bmat_ref: (M*D, D) = beta ⊗ I_D;  out_ref: (tile, D)
# ---------------------------------------------------------------------------
def _weighted_sum_kernel(z_ref, bmat_ref, out_ref):
    out_ref[...] = jnp.dot(
        z_ref[...], bmat_ref[...], preferred_element_type=jnp.float32
    ).astype(out_ref.dtype)


# ---------------------------------------------------------------------------
# Helpers
# ---------------------------------------------------------------------------
def _round_down(x, k):
    return (x // k) * k


def _default_vmem_limit():
    try:
        cap = pltpu.get_tpu_info().vmem_capacity_bytes
    except Exception:
        cap = 128 << 20
    # ~16 MiB headroom for compiler scratch; never request more than 64 MiB.
    # (v7x: 64 MiB physical -> ~48 MiB; v5e/v6e: 128 MiB -> 64 MiB.)
    return int(min(64 << 20, max(16 << 20, cap - (16 << 20))))


def _choose_tile(n, md, itemsize, vmem_limit_bytes, target_step_bytes):
    """Rows per grid step: byte-targeted, VMEM-capped, >=2 steps when possible."""
    granule = 8 if itemsize >= 4 else 16
    if n <= granule:
        return n                                  # single block == full dim
    row_bytes = max(1, md * itemsize)
    rows_target = max(granule, target_step_bytes // row_bytes)
    # double-buffered z tile should take at most ~half the VMEM budget
    rows_vmem = max(granule, (vmem_limit_bytes // 2) // (2 * row_bytes))
    # keep >= 2 grid steps so v7x's two TensorCores both get work
    rows_split = n // 2 if (n // 2) >= granule else _round_down(n, granule)
    tile = min(rows_target, rows_vmem, rows_split, n)
    if tile >= 512:
        tile = _round_down(tile, 512)   # so the in-kernel 512-row chunk divides
    else:
        tile = _round_down(tile, granule)
    return max(granule, tile)


# ---------------------------------------------------------------------------
# Wrapper
# ---------------------------------------------------------------------------
def semantic_attention(z, w1, b1, w2, *, target_step_bytes=4 << 20,
                       vmem_limit_bytes=None):
    n, m, d = z.shape
    h = w1.shape[1]
    md, mh = m * d, m * h
    dt = z.dtype

    if vmem_limit_bytes is None:
        vmem_limit_bytes = _default_vmem_limit()

    tile = _choose_tile(n, md, dt.itemsize, vmem_limit_bytes, target_step_bytes)
    num_tiles = -(-n // tile)
    chunk = tile if tile <= 512 else 512
    nchunks = tile // chunk

    z2 = z.reshape(n, md)                    # free row-major view; dtype untouched
    n_arr = jnp.array([n], dtype=jnp.int32)  # scalar-prefetched row count
    b1f = b1.reshape(1, h).astype(jnp.float32)

    cparams = pltpu.CompilerParams(
        dimension_semantics=("parallel",),
        vmem_limit_bytes=int(vmem_limit_bytes),
    )

    # ---- stage 1: per-tile partial sums of tanh(z W1 + b1) -----------------
    use_shared_w1 = (d % 128 == 0)
    if use_shared_w1:
        kern = functools.partial(_hidden_partial_shared_kernel, tile=tile,
                                 chunk=chunk, nchunks=nchunks, num_paths=m, d=d)
        w1_in = w1.astype(dt)                          # (D, H) shared across metapaths
        b1_in = b1f                                    # (1, H)
        w1_spec = pl.BlockSpec((d, h), lambda i, n_s: (0, 0))
        b1_spec = pl.BlockSpec((1, h), lambda i, n_s: (0, 0))
    else:
        # Small D: block-diagonal expansion keeps the (N, M*D) rows lane-dense.
        kern = functools.partial(_hidden_partial_blockdiag_kernel, tile=tile,
                                 chunk=chunk, nchunks=nchunks)
        eye_m = jnp.eye(m, dtype=jnp.float32)
        w1_in = (eye_m[:, None, :, None]
                 * w1.astype(jnp.float32)[None, :, None, :]
                 ).reshape(md, mh).astype(dt)
        b1_in = jnp.tile(b1f, (1, m))                  # (1, M*H)
        w1_spec = pl.BlockSpec((md, mh), lambda i, n_s: (0, 0))
        b1_spec = pl.BlockSpec((1, mh), lambda i, n_s: (0, 0))

    partials = pl.pallas_call(
        kern,
        out_shape=jax.ShapeDtypeStruct((num_tiles, 1, mh), jnp.float32),
        grid_spec=pltpu.PrefetchScalarGridSpec(
            num_scalar_prefetch=1,
            grid=(num_tiles,),
            in_specs=[
                pl.BlockSpec((tile, md), lambda i, n_s: (i, 0)),
                w1_spec,
                b1_spec,
            ],
            out_specs=pl.BlockSpec((1, 1, mh), lambda i, n_s: (i, 0, 0)),
        ),
        compiler_params=cparams,
    )(n_arr, z2, w1_in, b1_in)

    # ---- tiny O(M*H) epilogue in plain JAX ----------------------------------
    hsum = jnp.sum(partials[:, 0, :], axis=0).reshape(m, h)    # sum_n tanh(zW1+b1)
    w_mean = (hsum @ w2.astype(jnp.float32)) / jnp.float32(n)  # (M, 1) mean over N
    beta = jax.nn.softmax(w_mean, axis=0)                      # (M, 1)

    # beta folded onto a block-diagonal identity: (M*D, D)
    bmat = (beta[:, :, None] * jnp.eye(d, dtype=jnp.float32)).reshape(md, d)
    bmat = bmat.astype(dt)

    # ---- stage 2: weighted sum over metapaths (output in input dtype) -------
    out = pl.pallas_call(
        _weighted_sum_kernel,
        out_shape=jax.ShapeDtypeStruct((n, d), dt),
        grid_spec=pltpu.PrefetchScalarGridSpec(
            num_scalar_prefetch=0,
            grid=(num_tiles,),
            in_specs=[
                pl.BlockSpec((tile, md), lambda i: (i, 0)),
                pl.BlockSpec((md, d), lambda i: (0, 0)),
            ],
            out_specs=pl.BlockSpec((tile, d), lambda i: (i, 0)),
        ),
        compiler_params=cparams,
    )(z2, bmat)

    return out


# ---------------------------------------------------------------------------
# Pure-JAX reference (mirrors the PyTorch forward exactly, in f32).
# ---------------------------------------------------------------------------
def semantic_attention_ref(z, w1, b1, w2):
    zf = z.astype(jnp.float32)
    proj = jnp.tanh(zf @ w1 + b1.reshape(1, 1, -1)) @ w2       # (N, M, 1)
    w = proj.mean(axis=0)                                      # (M, 1)
    beta = jax.nn.softmax(w, axis=0)                           # (M, 1)
    return (beta[None, :, :] * zf).sum(axis=1)                 # (N, D)


if __name__ == "__main__":
    key = jax.random.PRNGKey(0)
    k1, k2, k3, k4, k5, k6, k7 = jax.random.split(key, 7)

    def check(z, w1, b1, w2, tol):
        out = jax.block_until_ready(semantic_attention(z, w1, b1, w2))
        ref = semantic_attention_ref(z, w1, b1, w2)
        assert out.shape == ref.shape
        diff = jnp.max(jnp.abs(out.astype(jnp.float32) - ref))
        # tolerances are loose enough to cover TPU default f32 matmul precision
        assert jnp.allclose(out.astype(jnp.float32), ref, atol=tol, rtol=tol), \
            f"max|diff|={float(diff)}"

    # Small shapes consistent with the module: N nodes, M metapaths, D, H.
    N, M, D, H = 16, 4, 32, 32
    z = jax.random.normal(k1, (N, M, D), dtype=jnp.float32)
    w1 = jax.random.normal(k2, (D, H), dtype=jnp.float32) * 0.1
    b1 = jax.random.normal(k3, (1, H), dtype=jnp.float32) * 0.1
    w2 = jax.random.normal(k4, (H, 1), dtype=jnp.float32) * 0.1

    # (1) f32, small-D block-diagonal path, evenly divided tiles
    check(z, w1, b1, w2, 1e-2)

    # (2) ragged node count -> multi-tile grid + in-kernel row masking
    z_ragged = jax.random.normal(k5, (20, M, D), dtype=jnp.float32)
    check(z_ragged, w1, b1, w2, 1e-2)

    # (3) lane-aligned D -> shared-W1 path (no M^2 block-diagonal expansion)
    N3, M3, D3, H3 = 24, 3, 128, 64
    z3 = jax.random.normal(k6, (N3, M3, D3), dtype=jnp.float32)
    w13 = jax.random.normal(k2, (D3, H3), dtype=jnp.float32) * 0.05
    b13 = jax.random.normal(k3, (1, H3), dtype=jnp.float32) * 0.05
    w23 = jax.random.normal(k4, (H3, 1), dtype=jnp.float32) * 0.05
    check(z3, w13, b13, w23, 1e-2)

    # (4) bf16 node features streamed natively (halved HBM traffic, bf16 MXU)
    zb = jax.random.normal(k7, (40, M, D), dtype=jnp.float32).astype(jnp.bfloat16)
    check(zb, w1, b1, w2, 5e-2)

    print("KERNEL_OK")
</pallas_src>

<mosaic_0001>
module attributes {stable_mosaic.version = 11 : i64} {
  func.func @_hidden_partial_blockdiag_kernel(%arg0: i32, %arg1: memref<1xi32, #tpu.memory_space<smem>>, %arg2: memref<8x128xf32, #tpu.memory_space<vmem>>, %arg3: memref<128x128xf32, #tpu.memory_space<vmem>>, %arg4: memref<1x128xf32, #tpu.memory_space<vmem>>, %arg5: memref<1x1x128xf32, #tpu.memory_space<vmem>>) attributes {dimension_semantics = [#tpu.dimension_semantics<parallel>], iteration_bounds = array<i64: 2>, scalar_prefetch = 1 : i64, scratch_operands = 0 : i64, tpu.core_type = #tpu.core_type<tc>, window_params = [{transform_indices = @transform_0, window_bounds = array<i64: 8, 128>}, {pipeline_mode = #tpu.pipeline_mode<synchronous>, transform_indices = @transform_1, window_bounds = array<i64: 128, 128>}, {pipeline_mode = #tpu.pipeline_mode<synchronous>, transform_indices = @transform_2, window_bounds = array<i64: 1, 128>}, {transform_indices = @transform_3, window_bounds = array<i64: 1, 1, 128>}]} {
    %c8_i32 = arith.constant 8 : i32
    %0 = arith.muli %arg0, %c8_i32 : i32
    %cst = arith.constant 0.000000e+00 : f32
    %1 = vector.broadcast %cst : f32 to vector<1x128xf32>
    %c0_i32 = arith.constant 0 : i32
    %c8_i32_0 = arith.constant 8 : i32
    %2 = arith.muli %c0_i32, %c8_i32_0 : i32
    %3 = tpu.assume_multiple %2, 8 : i32
    %4 = arith.index_cast %3 : i32 to index
    %c0 = arith.constant 0 : index
    %5 = vector.load %arg2[%4, %c0] : memref<8x128xf32, #tpu.memory_space<vmem>>, vector<8x128xf32>
    %c0_1 = arith.constant 0 : index
    %c0_2 = arith.constant 0 : index
    %6 = vector.load %arg3[%c0_1, %c0_2] : memref<128x128xf32, #tpu.memory_space<vmem>>, vector<128x128xf32>
    %cst_3 = arith.constant dense<0.000000e+00> : vector<8x128xf32>
    %7 = tpu.matmul %5, %6, %cst_3 {dimension_numbers = #tpu.dot_dimension_numbers<[1], [0], [0], [1], [0, 0, 1, 1], [], []>} : vector<8x128xf32>, vector<128x128xf32>, vector<8x128xf32> -> vector<8x128xf32>
    %c0_4 = arith.constant 0 : index
    %c0_5 = arith.constant 0 : index
    %8 = vector.load %arg4[%c0_4, %c0_5] : memref<1x128xf32, #tpu.memory_space<vmem>>, vector<1x128xf32>
    %9 = vector.broadcast %8 : vector<1x128xf32> to vector<8x128xf32>
    %10 = arith.addf %7, %9 : vector<8x128xf32>
    %11 = math.tanh %10 : vector<8x128xf32>
    %12 = arith.addi %0, %2 : i32
    %13 = tpu.iota {dimensions = array<i32: 0>} : vector<8x1xi32>
    %14 = vector.broadcast %12 : i32 to vector<8x1xi32>
    %15 = arith.addi %14, %13 : vector<8x1xi32>
    %c0_6 = arith.constant 0 : index
    %16 = memref.load %arg1[%c0_6] : memref<1xi32, #tpu.memory_space<smem>>
    %17 = vector.broadcast %16 : i32 to vector<8x1xi32>
    %18 = arith.cmpi slt, %15, %17 : vector<8x1xi32>
    %cst_7 = arith.constant 0.000000e+00 : f32
    %19 = vector.shape_cast %18 : vector<8x1xi1> to vector<8x1xi1>
    %20 = vector.broadcast %19 : vector<8x1xi1> to vector<8x128xi1>
    %21 = vector.broadcast %cst_7 : f32 to vector<8x128xf32>
    %22 = arith.select %20, %11, %21 : vector<8x128xi1>, vector<8x128xf32>
    %cst_8 = arith.constant dense<0.000000e+00> : vector<128xf32>
    %23 = vector.multi_reduction <add>, %22, %cst_8 [0] : vector<8x128xf32> to vector<128xf32>
    %24 = vector.shape_cast %23 : vector<128xf32> to vector<1x128xf32>
    %25 = arith.addf %1, %24 : vector<1x128xf32>
    %c1_i32 = arith.constant 1 : i32
    %26 = vector.shape_cast %25 : vector<1x128xf32> to vector<1x1x128xf32>
    %c0_9 = arith.constant 0 : index
    %c0_10 = arith.constant 0 : index
    %c0_11 = arith.constant 0 : index
    %27 = vector.load %arg5[%c0_9, %c0_10, %c0_11] : memref<1x1x128xf32, #tpu.memory_space<vmem>>, vector<1x1x128xf32>
    tpu.vector_store %arg5[%c0_9, %c0_10, %c0_11], %26 {strides = array<i32>} : memref<1x1x128xf32, #tpu.memory_space<vmem>>, vector<1x1x128xf32>,
    return
  }
  func.func @transform_0(%arg0: i32, %arg1: memref<1xi32, #tpu.memory_space<smem>>) -> (i32, i32) {
    %c0_i32 = arith.constant 0 : i32
    %c0_i32_0 = arith.constant 0 : i32
    return %arg0, %c0_i32 : i32, i32
  }
  func.func @transform_1(%arg0: i32, %arg1: memref<1xi32, #tpu.memory_space<smem>>) -> (i32, i32) {
    %c0_i32 = arith.constant 0 : i32
    %c0_i32_0 = arith.constant 0 : i32
    %c0_i32_1 = arith.constant 0 : i32
    return %c0_i32, %c0_i32_0 : i32, i32
  }
  func.func @transform_2(%arg0: i32, %arg1: memref<1xi32, #tpu.memory_space<smem>>) -> (i32, i32) {
    %c0_i32 = arith.constant 0 : i32
    %c0_i32_0 = arith.constant 0 : i32
    %c0_i32_1 = arith.constant 0 : i32
    return %c0_i32, %c0_i32_0 : i32, i32
  }
  func.func @transform_3(%arg0: i32, %arg1: memref<1xi32, #tpu.memory_space<smem>>) -> (i32, i32, i32) {
    %c0_i32 = arith.constant 0 : i32
    %c0_i32_0 = arith.constant 0 : i32
    %c0_i32_1 = arith.constant 0 : i32
    return %arg0, %c0_i32, %c0_i32_0 : i32, i32, i32
  }
}

</mosaic_0001>

<llo_original>
// kernel: tpu_custom_call.1
$region0: #{tpu_custom_call.1}
  #allocation0 [shape = 'u32[]', space=smem, size = 0x4, offset = 0x4, fixed_abs, tag = 'smem constant byte address 0x4 - core index']
  #allocation1 [shape = 'u32[144,128]{1,0:T(1,128)}', space=vmem, size = 0x12000, scoped, tag = 'internal scratch']
  #allocation2 [shape = 's32[1]{0}', space=sflag, size = 0x4, scoped, tag = 'scoped memory for tpu_custom_call.1']
  #allocation3 [shape = 's32[1]{0:T(128)S(6)}', space=smem, size = 0x200, scoped, tag = 'prefetched SMEM operand 0']
  %s0 = inlined_call_operand.<no memory space> [shape: s32[1], index: 0, kind: input, shape index: {}]
  %s1 = inlined_call_operand.hbm [shape: f32[16,128], index: 1, kind: input, shape index: {}]
  %s2 = inlined_call_operand.hbm [shape: f32[128,128], index: 2, kind: input, shape index: {}]
  %s3 = inlined_call_operand.vmem [shape: f32[1,128], index: 3, kind: input, shape index: {}]
  %s4 = inlined_call_operand.hbm [shape: f32[2,1,128], index: 4, kind: output, shape index: {}]
  %s5 = sld [smem:[#allocation0]]
  $region53: #{tpu_custom_call.1} parent=0
    _
  %s7 = ssub.s32 1, %s5
  %s8 = scalar_select 0, %s7, %s5
  %9 = sst [smem:[#allocation3]] %s0
  $region1: #{tpu_custom_call.1} parent=0
    #allocation4 [shape = 'u8[8192]{0}', space=vmem, size = 0x2000, scoped, tag = 'input window, operand 1']
    #allocation5 [shape = 's32[2]{0}', space=sflag, size = 0x8, scoped, tag = 'scoped memory for tpu_custom_call.1']
    #allocation6 [shape = 's32[2]{0}', space=sflag, size = 0x8, scoped, tag = 'scoped memory for tpu_custom_call.1']
    #allocation7 [shape = 'u8[65536]{0}', space=vmem, size = 0x10000, scoped, tag = 'input window, operand 2, single buffered']
    #allocation8 [shape = 's32[1]{0}', space=sflag, size = 0x4, scoped, tag = 'scoped memory for tpu_custom_call.1']
    #allocation9 [shape = 'u8[1024]{0}', space=vmem, size = 0x400, scoped, tag = 'output window, operand 0']
    %10 = vsyncpa [#allocation5], 0
    %s11 = scalar_lea.sflag [#allocation5], 1
    %12 = vsyncpa %s11, 0
    %13 = vsyncpa [#allocation8], 0
    %14 = vsyncpa [#allocation6], 0
    %s15 = scalar_lea.sflag [#allocation6], 1
    %16 = vsyncpa %s15, 0
    loop: start=0, step=1, limit=4
    $region2: #{tpu_custom_call.1} parent=1 // loop_pre_header
      _
    $region3: #{tpu_custom_call.1} parent=1 // loop_header
      %s18 = sphi 0, %s22
      %p19 = scmp.ge.s32.totalorder %s18, 4
      %s28 = sphi 0, %s30
      %s31 = sphi 0, %s28
      %s32 = sphi 0, %s31
      %s48 = sphi 0, %s32
      %s52 = sphi 0, %s52
      %s54 = sphi 0, %s52
      %s55 = sphi 0, %s54
      %s69 = sphi 0, %s55
      %s73 = sphi 0, %s73
      %s75 = sphi 0, %s73
      %s76 = sphi 0, %s75
      %s90 = sphi 0, %s76
      %s96 = sphi 0, %s98
      %s99 = sphi 0, %s96
      %s100 = sphi 0, %s99
      %s116 = sphi 0, %s100
    $region4: #{tpu_custom_call.1} parent=1 // loop_header_branch
      %21 = sbr.rel (%p19) target = $region8
    $region5: #{tpu_custom_call.1} parent=1 // loop_body
      %s23 = ssub.s32 %s18, 1
      %s24 = ssub.s32 %s18, 2
      %s25 = sadd.s32 %s18, 1
      %s26 = ssub.s32 %s18, %s25
      %p27 = scmp.eq.s32.totalorder %s26, 0
      %s29 = sadd.s32 %s28, 1
      %s30 = scalar_select %p27, %s28, %s29
      %p33 = pneg %p27
      %p34 = scmp.eq.s32.totalorder %s18, 1
      %p35 = por %p33, %p34
      %p36 = scmp.ne.s32.totalorder %s28, %s31
      %p37 = scmp.eq.s32.totalorder %s18, 0
      %p38 = por %p36, %p37
      %p39 = scmp.ne.s32.totalorder %s28, %s31
      %p40 = scmp.eq.s32.totalorder %s23, 1
      %p41 = por %p39, %p40
      %p42 = scmp.ne.s32.totalorder %s31, %s32
      %p43 = scmp.eq.s32.totalorder %s23, 0
      %p44 = por %p42, %p43
      %p45 = scmp.ne.s32.totalorder %s31, %s32
      %p46 = scmp.eq.s32.totalorder %s24, 1
      %p47 = por %p45, %p46
      %p49 = scmp.ne.s32.totalorder %s32, %s48
      %p50 = scmp.eq.s32.totalorder %s24, 0
      %p51 = por %p49, %p50
      %s53 = sadd.s32 %s52, 1
      %p56 = scmp.eq.s32.totalorder %s18, 1
      %p57 = scmp.ne.s32.totalorder %s52, %s54
      %p58 = scmp.eq.s32.totalorder %s18, 0
      %p59 = por %p57, %p58
      %p60 = scmp.ne.s32.totalorder %s52, %s54
      %p61 = scmp.eq.s32.totalorder %s23, 1
      %p62 = por %p60, %p61
      %p63 = scmp.ne.s32.totalorder %s54, %s55
      %p64 = scmp.eq.s32.totalorder %s23, 0
      %p65 = por %p63, %p64
      %p66 = scmp.ne.s32.totalorder %s54, %s55
      %p67 = scmp.eq.s32.totalorder %s24, 1
      %p68 = por %p66, %p67
      %p70 = scmp.ne.s32.totalorder %s55, %s69
      %p71 = scmp.eq.s32.totalorder %s24, 0
      %p72 = por %p70, %p71
      %s74 = sadd.s32 %s73, 1
      %p77 = scmp.eq.s32.totalorder %s18, 1
      %p78 = scmp.ne.s32.totalorder %s73, %s75
      %p79 = scmp.eq.s32.totalorder %s18, 0
      %p80 = por %p78, %p79
      %p81 = scmp.ne.s32.totalorder %s73, %s75
      %p82 = scmp.eq.s32.totalorder %s23, 1
      %p83 = por %p81, %p82
      %p84 = scmp.ne.s32.totalorder %s75, %s76
      %p85 = scmp.eq.s32.totalorder %s23, 0
      %p86 = por %p84, %p85
      %p87 = scmp.ne.s32.totalorder %s75, %s76
      %p88 = scmp.eq.s32.totalorder %s24, 1
      %p89 = por %p87, %p88
      %p91 = scmp.ne.s32.totalorder %s76, %s90
      %p92 = scmp.eq.s32.totalorder %s24, 0
      %p93 = por %p91, %p92
      %s94 = ssub.s32 %s18, %s25
      %p95 = scmp.eq.s32.totalorder %s94, 0
      %s97 = sadd.s32 %s96, 1
      %s98 = scalar_select %p95, %s96, %s97
      %p101 = pneg %p95
      %p102 = scmp.eq.s32.totalorder %s18, 1
      %p103 = por %p101, %p102
      %p104 = scmp.ne.s32.totalorder %s96, %s99
      %p105 = scmp.eq.s32.totalorder %s18, 0
      %p106 = por %p104, %p105
      %p107 = scmp.ne.s32.totalorder %s96, %s99
      %p108 = scmp.eq.s32.totalorder %s23, 1
      %p109 = por %p107, %p108
      %p110 = scmp.ne.s32.totalorder %s99, %s100
      %p111 = scmp.eq.s32.totalorder %s23, 0
      %p112 = por %p110, %p111
      %p113 = scmp.ne.s32.totalorder %s99, %s100
      %p114 = scmp.eq.s32.totalorder %s24, 1
      %p115 = por %p113, %p114
      %p117 = scmp.ne.s32.totalorder %s100, %s116
      %p118 = scmp.eq.s32.totalorder %s24, 0
      %p119 = por %p117, %p118
      %p120 = scmp.le.s32.totalorder 1, %s18
      %p121 = scmp.lt.s32.totalorder %s18, 3
      %p122 = pnand %p120, %p121
      %p123 = pneg %p122
      // Predicated region
      $region9: #{tpu_custom_call.1} parent=5 // pred_check
        _
      $region10: #{tpu_custom_call.1} parent=5 // pred_check_branch
        %125 = sbr.rel (%p122) target = $region12
      $region11: #{tpu_custom_call.1} parent=5 // pred_region
        %s126 = ssub.s32 %s18, 1
        // Predicated region
        $region13: #{tpu_custom_call.1} parent=11 // pred_check
          %p127 = pneg %p65
        $region14: #{tpu_custom_call.1} parent=11 // pred_check_branch
          %129 = sbr.rel (%p127) target = $region16
        $region15: #{tpu_custom_call.1} parent=11 // pred_region
          %s131 = ssub.s32 2048, 2048
          %132 = vsyncadd [#allocation8], %s131
          %s133 = sshll.u32 [#allocation7], 4
          %s134 = int_to_ptr.vmem [resolvable:$true] %s133
          %139 = dma.hbm_to_vmem [thread:$0]  %s2, 2048, %s134, [#allocation8], 128, 128, 8
        $region16: #{tpu_custom_call.1} parent=11 // pred_fallthru
          _
        // Predicated region
        $region17: #{tpu_custom_call.1} parent=11 // pred_check
          %p140 = pneg %p86
        $region18: #{tpu_custom_call.1} parent=11 // pred_check_branch
          %142 = sbr.rel (%p140) target = $region20
        $region19: #{tpu_custom_call.1} parent=11 // pred_region
          _
        $region20: #{tpu_custom_call.1} parent=11 // pred_fallthru
          _
      $region12: #{tpu_custom_call.1} parent=5 // pred_fallthru
        _
      %p143 = scmp.lt.s32.totalorder %s18, 2
      // Predicated region
      $region21: #{tpu_custom_call.1} parent=5 // pred_check
        %p144 = pneg %p143
      $region22: #{tpu_custom_call.1} parent=5 // pred_check_branch
        %146 = sbr.rel (%p144) target = $region24
      $region23: #{tpu_custom_call.1} parent=5 // pred_region
        // Predicated region
        $region25: #{tpu_custom_call.1} parent=23 // pred_check
          %p147 = pneg %p38
        $region26: #{tpu_custom_call.1} parent=23 // pred_check_branch
          %149 = sbr.rel (%p147) target = $region28
        $region27: #{tpu_custom_call.1} parent=23 // pred_region
          %s150 = sand.u32 %s28, 1
          %s151 = scalar_lea.sflag [#allocation5], %s150
          %s152 = sand.u32 %s28, 1
          %s153 = smul.addr %s152, 8
          %s154 = scalar_lea.vmem [#allocation4], %s153
          %s156 = ssub.s32 128, 128
          %157 = vsyncadd %s151, %s156
          %s158 = smul.addr %s18, 128
          %s159 = scalar_lea.hbm %s1, %s158
          %s161 = sshll.u32 %s154, 4
          %s162 = int_to_ptr.vmem [resolvable:$true] %s161
          %164 = dma.hbm_to_vmem [thread:$0]  %s159, 128, %s162, %s151
        $region28: #{tpu_custom_call.1} parent=23 // pred_fallthru
          _
      $region24: #{tpu_custom_call.1} parent=5 // pred_fallthru
        _
      %p165 = scmp.le.s32.totalorder 1, %s18
      %p166 = scmp.lt.s32.totalorder %s18, 3
      %p167 = pnand %p165, %p166
      %p168 = pneg %p167
      // Predicated region
      $region29: #{tpu_custom_call.1} parent=5 // pred_check
        _
      $region30: #{tpu_custom_call.1} parent=5 // pred_check_branch
        %170 = sbr.rel (%p167) target = $region32
      $region31: #{tpu_custom_call.1} parent=5 // pred_region
        %s171 = ssub.s32 %s18, 1
        %s172 = sand.u32 %s31, 1
        %s173 = scalar_lea.sflag [#allocation5], %s172
        %s174 = sand.u32 %s31, 1
        %s175 = smul.addr %s174, 8
        %s176 = scalar_lea.vmem [#allocation4], %s175
        // Predicated region
        $region33: #{tpu_custom_call.1} parent=31 // pred_check
          %p177 = pneg %p44
        $region34: #{tpu_custom_call.1} parent=31 // pred_check_branch
          %179 = sbr.rel (%p177) target = $region36
        $region35: #{tpu_custom_call.1} parent=31 // pred_region
          %180 = dma.done %s173, 128
        $region36: #{tpu_custom_call.1} parent=31 // pred_fallthru
          _
        // Predicated region
        $region37: #{tpu_custom_call.1} parent=31 // pred_check
          %p181 = pneg %p65
        $region38: #{tpu_custom_call.1} parent=31 // pred_check_branch
          %183 = sbr.rel (%p181) target = $region40
        $region39: #{tpu_custom_call.1} parent=31 // pred_region
          %184 = dma.done [#allocation8], 2048
        $region40: #{tpu_custom_call.1} parent=31 // pred_fallthru
          _
        %s185 = sand.u32 %s31, 1
        %s186 = scalar_lea.sflag [#allocation5], %s185
        %s187 = sand.u32 %s31, 1
        %s188 = smul.addr %s187, 8
        %s189 = scalar_lea.vmem [#allocation4], %s188
        %p190 = pneg %p44
        %p191 = pneg %p41
        %p192 = pneg %p65
        %p193 = pneg %p62
        %p194 = pneg %p86
        %p195 = pneg %p83
        %p196 = pneg %p112
        %p197 = pneg %p109
        %s198 = sand.u32 %s99, 1
        %s199 = scalar_lea.sflag [#allocation6], %s198
        %s200 = sand.u32 %s99, 1
        %s201 = scalar_lea.vmem [#allocation9], %s200
        %s202 = smul.u32 %s23, 8
        %v203 = vld [vmem:[%s176] sm:$0xff]
        %v204 = vld [vmem:[#allocation7] sm:$0xff]
        %v205 = vld [vmem:[#allocation7 + $0x8] sm:$0xff]
        %v206 = vld [vmem:[#allocation7 + $0x10] sm:$0xff]
        %v207 = vld [vmem:[#allocation7 + $0x18] sm:$0xff]
        %v208 = vld [vmem:[#allocation7 + $0x20] sm:$0xff]
        %v209 = vld [vmem:[#allocation7 + $0x28] sm:$0xff]
        %v210 = vld [vmem:[#allocation7 + $0x30] sm:$0xff]
        %v211 = vld [vmem:[#allocation7 + $0x38] sm:$0xff]
        %v212 = vld [vmem:[#allocation7 + $0x40] sm:$0xff]
        %v213 = vld [vmem:[#allocation7 + $0x48] sm:$0xff]
        %v214 = vld [vmem:[#allocation7 + $0x50] sm:$0xff]
        %v215 = vld [vmem:[#allocation7 + $0x58] sm:$0xff]
        %v216 = vld [vmem:[#allocation7 + $0x60] sm:$0xff]
        %v217 = vld [vmem:[#allocation7 + $0x68] sm:$0xff]
        %v218 = vld [vmem:[#allocation7 + $0x70] sm:$0xff]
        %v219 = vld [vmem:[#allocation7 + $0x78] sm:$0xff]
        %v220 = vld [vmem:[%s3] sm:$0x1]
        %v222 = vlaneseq
        %v223 = vshrl.u32 %v222, 7
        %v224 = vsub.s32 0, %v223
        %v225 = vrot.slane %v220, %v224
        %227 = vmatprep.subr.mxu0 0.0
        %228 = vmatpush1.msra.mxu0 %v219
        %229 = vmatprep.subr.mxu0 0.0
        %230 = vmatpush1.msra.mxu0 %v218
        %231 = vmatprep.subr.mxu0 0.0
        %232 = vmatpush1.msra.mxu0 %v217
        %233 = vmatprep.subr.mxu0 0.0
        %234 = vmatpush1.msra.mxu0 %v216
        %235 = vmatprep.subr.mxu0 0.0
        %236 = vmatpush1.msra.mxu0 %v215
        %237 = vmatprep.subr.mxu0 0.0
        %238 = vmatpush1.msra.mxu0 %v214
        %239 = vmatprep.subr.mxu0 0.0
        %240 = vmatpush1.msra.mxu0 %v213
        %241 = vmatprep.subr.mxu0 0.0
        %242 = vmatpush1.msra.mxu0 %v212
        %243 = vmatprep.subr.mxu0 0.0
        %244 = vmatpush1.msra.mxu0 %v211
        %245 = vmatprep.subr.mxu0 0.0
        %246 = vmatpush1.msra.mxu0 %v210
        %247 = vmatprep.subr.mxu0 0.0
        %248 = vmatpush1.msra.mxu0 %v209
        %249 = vmatprep.subr.mxu0 0.0
        %250 = vmatpush1.msra.mxu0 %v208
        %251 = vmatprep.subr.mxu0 0.0
        %252 = vmatpush1.msra.mxu0 %v207
        %253 = vmatprep.subr.mxu0 0.0
        %254 = vmatpush1.msra.mxu0 %v206
        %255 = vmatprep.subr.mxu0 0.0
        %256 = vmatpush1.msra.mxu0 %v205
        %257 = vmatprep.subr.mxu0 0.0
        %258 = vmatpush1.msra.mxu0 %v204
        %259 = vmatprep.subr.mxu0 0.0
        %260 = vmatpush2.msra.mxu0 0.0
        %261 = vmatprep.subr.mxu0 0.0
        %262 = vmatpush2.msra.mxu0 0.0
        %263 = vmatprep.subr.mxu0 0.0
        %264 = vmatpush2.msra.mxu0 0.0
        %265 = vmatprep.subr.mxu0 0.0
        %266 = vmatpush2.msra.mxu0 0.0
        %267 = vmatprep.subr.mxu0 0.0
        %268 = vmatpush2.msra.mxu0 0.0
        %269 = vmatprep.subr.mxu0 0.0
        %270 = vmatpush2.msra.mxu0 0.0
        %271 = vmatprep.subr.mxu0 0.0
        %272 = vmatpush2.msra.mxu0 0.0
        %273 = vmatprep.subr.mxu0 0.0
        %274 = vmatpush2.msra.mxu0 0.0
        %275 = vmatprep.subr.mxu0 0.0
        %276 = vmatpush2.msra.mxu0 0.0
        %277 = vmatprep.subr.mxu0 0.0
        %278 = vmatpush2.msra.mxu0 0.0
        %279 = vmatprep.subr.mxu0 0.0
        %280 = vmatpush2.msra.mxu0 0.0
        %281 = vmatprep.subr.mxu0 0.0
        %282 = vmatpush2.msra.mxu0 0.0
        %283 = vmatprep.subr.mxu0 0.0
        %284 = vmatpush2.msra.mxu0 0.0
        %285 = vmatprep.subr.mxu0 0.0
        %286 = vmatpush2.msra.mxu0 0.0
        %287 = vmatprep.subr.mxu0 0.0
        %288 = vmatpush2.msra.mxu0 0.0
        %289 = vmatprep.subr.mxu0 0.0
        %290 = vmatpush2.msra.mxu0 0.0
        %291 = vmatprep.mubr.f32.mxu0 0.0
        %292 = vmatmul.mubr.f32.gmra.mxu0 %v203
        %v293 = vpop.f32.mrf.mxu0
        %v294 = vadd.f32 %v225, %v293
        %v295 = vpop.f32.mrf.mxu0
        %296 = vdwg.mxu0
        %v297 = vtanh.pop %v294
        %v298 = vlaneseq
        %v299 = vshrl.u32 %v298, 7
        %v300 = vstv %s202
        %v301 = vadd.s32 %v300, %v299
        %s302 = sld [smem:[#allocation3]]
        %v303 = vstv %s302
        %vm304 = vcmp.lt.s32.totalorder %v301, %v303
        %v305 = vsel %vm304, 1, 0
        %vm306 = vcmp.eq.s32.totalorder %v305, 1
        %v307 = vsel %vm306, %v297, 0.0
        %v308 = vrot.slane %v307, 4
        %v309 = vadd.f32 %v307, %v308
        %v310 = vrot.slane %v309, 2
        %v311 = vadd.f32 %v309, %v310
        %v312 = vrot.slane %v311, 1
        %v313 = vadd.f32 %v311, %v312
        %v314 = vadd.f32 %v313, 0.0
        %315 = vst [vmem:[%s201] sm:$0x1] %v314
        %s316 = sand.u32 %s99, 1
        %s317 = scalar_lea.sflag [#allocation6], %s316
        %s318 = sand.u32 %s99, 1
        %s319 = scalar_lea.vmem [#allocation9], %s318
        // Predicated region
        $region41: #{tpu_custom_call.1} parent=31 // pred_check
          %p320 = pneg %p109
        $region42: #{tpu_custom_call.1} parent=31 // pred_check_branch
          %322 = sbr.rel (%p320) target = $region44
        $region43: #{tpu_custom_call.1} parent=31 // pred_region
          %s324 = ssub.s32 16, 16
          %325 = vsyncadd %s317, %s324
          %s326 = smul.addr %s23, 16
          %s327 = scalar_lea.hbm %s4, %s326
          %s329 = sshll.u32 %s319, 4
          %s330 = int_to_ptr.vmem [resolvable:$true] %s329
          %332 = dma.vmem_to_hbm [thread:$0]  %s330, 16, %s327, %s317
        $region44: #{tpu_custom_call.1} parent=31 // pred_fallthru
          _
      $region32: #{tpu_custom_call.1} parent=5 // pred_fallthru
        _
      %p333 = scmp.le.s32.totalorder 2, %s18
      // Predicated region
      $region45: #{tpu_custom_call.1} parent=5 // pred_check
        %p334 = pneg %p333
      $region46: #{tpu_custom_call.1} parent=5 // pred_check_branch
        %336 = sbr.rel (%p334) target = $region48
      $region47: #{tpu_custom_call.1} parent=5 // pred_region
        %s337 = ssub.s32 %s18, 2
        // Predicated region
        $region49: #{tpu_custom_call.1} parent=47 // pred_check
          %p338 = pneg %p115
        $region50: #{tpu_custom_call.1} parent=47 // pred_check_branch
          %340 = sbr.rel (%p338) target = $region52
        $region51: #{tpu_custom_call.1} parent=47 // pred_region
          %s341 = sand.u32 %s100, 1
          %s342 = scalar_lea.sflag [#allocation6], %s341
          %s343 = sand.u32 %s100, 1
          %s344 = scalar_lea.vmem [#allocation9], %s343
          %345 = dma.done %s342, 16
        $region52: #{tpu_custom_call.1} parent=47 // pred_fallthru
          _
      $region48: #{tpu_custom_call.1} parent=5 // pred_fallthru
        _
    $region6: #{tpu_custom_call.1} parent=1 // loop_footer
      %s22 = sadd.s32 1, %s18
    $region7: #{tpu_custom_call.1} parent=1 // loop_footer_branch
      %17 = sbr.rel target = $region3
    $region8: #{tpu_custom_call.1} parent=1 // loop_exit
      _
    %346 = vsyncpa [#allocation5], 1
    %s347 = scalar_lea.sflag [#allocation5], 1
    %348 = vsyncpa %s347, 1
    %349 = vsyncpa [#allocation8], 1
    %350 = vsyncpa [#allocation6], 1
    %s351 = scalar_lea.sflag [#allocation6], 1
    %352 = vsyncpa %s351, 1

</llo_original>
